<compile_context>
chip_gen: v7x
topology: tpu7x:2x2x1
jax: 0.10.0
libtpu: 0.0.40
codegen_flags: <defaults>
</compile_context>

<pallas_src>
import functools

import jax
import jax.numpy as jnp
from jax import lax
from jax.experimental import pallas as pl
from jax.experimental.pallas import tpu as pltpu


# ----------------------------- kernel ---------------------------------------
def _causal_im2col(x, kernel_size, dilation):
    """x: (B, L, C) -> (B*L, K*C).

    Column block k (width C) holds x[b, t - (K-1-k)*dilation, :] (zeros where the
    index is negative), matching a causal (left-padded + chomped) dilated conv.
    """
    B, L, C = x.shape
    pad = (kernel_size - 1) * dilation
    zeros = jnp.zeros((B, pad, C), dtype=x.dtype)
    xpad = jnp.concatenate([zeros, x], axis=1)                     # (B, pad+L, C)
    cols = [xpad[:, k * dilation:k * dilation + L, :]              # static slices
            for k in range(kernel_size)]
    X = jnp.concatenate(cols, axis=-1)                             # (B, L, K*C)
    return X.reshape(B * L, kernel_size * C)


def temporal_block_kernel(x_ref, w1_ref, b1_ref, w2_ref, b2_ref, *rest,
                          kernel_size, dilation):
    """Whole TemporalBlock for the whole batch.

    x_ref: (B, L, Cin) — channels on lanes.
    w1_ref: (K*Cin, Cout), w2_ref: (K*Cout, Cout)  (im2col-flattened conv weights)
    b1_ref/b2_ref: (1, Cout)
    rest = (ws_ref, bs_ref, o_ref) when a 1x1-conv shortcut exists, else (o_ref,).
    o_ref: (B*L, Cout)
    """
    o_ref = rest[-1]
    shortcut_refs = rest[:-1]

    x = x_ref[...]                                                 # (B, L, Cin) f32
    B, L, Cin = x.shape
    Cout = w1_ref.shape[1]

    # --- conv1 (weight-normed causal dilated conv) -> ReLU  (one MXU matmul) ---
    X1 = _causal_im2col(x, kernel_size, dilation)                  # (B*L, K*Cin)
    h1 = jnp.dot(X1, w1_ref[...], preferred_element_type=jnp.float32) + b1_ref[...]
    h1 = jnp.maximum(h1, 0.0)                                      # ReLU (Dropout = id)
    h1 = h1.reshape(B, L, Cout)

    # --- conv2 (weight-normed causal dilated conv) -> ReLU  (one MXU matmul) ---
    X2 = _causal_im2col(h1, kernel_size, dilation)                 # (B*L, K*Cout)
    h2 = jnp.dot(X2, w2_ref[...], preferred_element_type=jnp.float32) + b2_ref[...]
    h2 = jnp.maximum(h2, 0.0)                                      # (B*L, Cout)

    # --- shortcut (+ final ReLU) ---
    xf = x.reshape(B * L, Cin)
    if shortcut_refs:                                              # 1x1 conv shortcut
        ws_ref, bs_ref = shortcut_refs
        s = jnp.dot(xf, ws_ref[...], preferred_element_type=jnp.float32) + bs_ref[...]
    else:                                                          # identity shortcut
        s = xf
    o_ref[...] = jnp.maximum(h2 + s, 0.0)


# ----------------------------- wrapper ---------------------------------------
def weight_norm_weight(v, g):
    """PyTorch nn.utils.weight_norm (dim=0): W = g * V / ||V|| per output channel."""
    norm = jnp.sqrt(jnp.sum(v * v, axis=(1, 2), keepdims=True))
    return v * (g.reshape(-1, 1, 1) / norm)


def _conv_w_to_im2col(w):
    """(Cout, Cin, K) torch conv weight -> (K*Cin, Cout), tap-major (matches im2col)."""
    O, C, K = w.shape
    return jnp.transpose(w, (2, 1, 0)).reshape(K * C, O)


def temporal_block(x, params, *, kernel_size, dilation):
    """x: (B, Cin, L)  (PyTorch Conv1d layout).  Returns (B, Cout, L)."""
    B, Cin, L = x.shape
    w1 = weight_norm_weight(params['conv1_v'], params['conv1_g'])
    w2 = weight_norm_weight(params['conv2_v'], params['conv2_g'])
    Cout = w1.shape[0]

    w1_m = _conv_w_to_im2col(w1)                                   # (K*Cin,  Cout)
    w2_m = _conv_w_to_im2col(w2)                                   # (K*Cout, Cout)
    b1 = params['conv1_b'].reshape(1, Cout)
    b2 = params['conv2_b'].reshape(1, Cout)

    x_blc = jnp.transpose(x, (0, 2, 1)).astype(jnp.float32)        # (B, L, Cin)

    inputs = [x_blc, w1_m, b1, w2_m, b2]
    if Cin != Cout:                                                # 1x1-conv shortcut
        ws = params['short_w'][:, :, 0].T                          # (Cin, Cout)
        bs = params['short_b'].reshape(1, Cout)
        inputs += [ws, bs]

    in_specs = [pl.BlockSpec(a.shape, lambda i, _nd=a.ndim: (0,) * _nd)
                for a in inputs]

    kernel = functools.partial(temporal_block_kernel,
                               kernel_size=kernel_size, dilation=dilation)
    out = pl.pallas_call(
        kernel,
        out_shape=jax.ShapeDtypeStruct((B * L, Cout), jnp.float32),
        grid=(1,),
        in_specs=in_specs,
        out_specs=pl.BlockSpec((B * L, Cout), lambda i: (0, 0)),
        compiler_params=pltpu.CompilerParams(
            dimension_semantics=("arbitrary",)),
    )(*inputs)

    return jnp.transpose(out.reshape(B, L, Cout), (0, 2, 1))       # (B, Cout, L)


# ----------------------------- params ----------------------------------------
def init_params(key, *, in_channels, out_channels, kernel_size):
    ks = jax.random.split(key, 8)
    p = {
        'conv1_v': 0.5 * jax.random.normal(ks[0], (out_channels, in_channels, kernel_size), jnp.float32),
        'conv1_g': 1.0 + 0.1 * jax.random.normal(ks[1], (out_channels,), jnp.float32),
        'conv1_b': 0.1 * jax.random.normal(ks[2], (out_channels,), jnp.float32),
        'conv2_v': 0.5 * jax.random.normal(ks[3], (out_channels, out_channels, kernel_size), jnp.float32),
        'conv2_g': 1.0 + 0.1 * jax.random.normal(ks[4], (out_channels,), jnp.float32),
        'conv2_b': 0.1 * jax.random.normal(ks[5], (out_channels,), jnp.float32),
    }
    if in_channels != out_channels:
        p['short_w'] = 0.5 * jax.random.normal(ks[6], (out_channels, in_channels, 1), jnp.float32)
        p['short_b'] = 0.1 * jax.random.normal(ks[7], (out_channels,), jnp.float32)
    return p


# ----------------------------- reference (pure JAX, independent) --------------
def _ref_causal_conv(x, w, b, dilation):
    """x: (B, C, L), w: (O, C, K) -> causal (chomped) dilated conv, torch semantics."""
    K = w.shape[-1]
    pad = (K - 1) * dilation
    y = lax.conv_general_dilated(
        x, w, window_strides=(1,), padding=[(pad, pad)],
        rhs_dilation=(dilation,), dimension_numbers=('NCH', 'OIH', 'NCH'))
    y = y[:, :, :x.shape[-1]]                                      # Chomp1d
    return y + b.reshape(1, -1, 1)


def temporal_block_reference(x, params, *, kernel_size, dilation):
    w1 = weight_norm_weight(params['conv1_v'], params['conv1_g'])
    w2 = weight_norm_weight(params['conv2_v'], params['conv2_g'])
    h = jax.nn.relu(_ref_causal_conv(x, w1, params['conv1_b'], dilation))
    h = jax.nn.relu(_ref_causal_conv(h, w2, params['conv2_b'], dilation))
    if 'short_w' in params:
        s = lax.conv_general_dilated(x, params['short_w'], (1,), [(0, 0)],
                                     dimension_numbers=('NCH', 'OIH', 'NCH'))
        s = s + params['short_b'].reshape(1, -1, 1)
    else:
        s = x
    return jax.nn.relu(h + s)


# ----------------------------- main -------------------------------------------
if __name__ == "__main__":
    key = jax.random.PRNGKey(0)
    kx, kp, kp2 = jax.random.split(key, 3)

    # Case 1: in_channels != out_channels -> 1x1-conv shortcut.
    batch, in_ch, out_ch, seq = 2, 4, 8, 16
    kernel_size, dilation = 3, 2
    x = jax.random.normal(kx, (batch, in_ch, seq), jnp.float32)
    params = init_params(kp, in_channels=in_ch, out_channels=out_ch,
                         kernel_size=kernel_size)

    out = temporal_block(x, params, kernel_size=kernel_size, dilation=dilation)
    out = jax.block_until_ready(out)
    ref = temporal_block_reference(x, params, kernel_size=kernel_size, dilation=dilation)
    assert out.shape == (batch, out_ch, seq)
    assert jnp.allclose(out, ref, atol=1e-4, rtol=1e-4), "mismatch (conv shortcut case)"

    # Case 2: in_channels == out_channels -> identity shortcut.
    x2 = jax.random.normal(jax.random.fold_in(kx, 1), (batch, out_ch, seq), jnp.float32)
    params2 = init_params(kp2, in_channels=out_ch, out_channels=out_ch,
                          kernel_size=kernel_size)
    out2 = jax.block_until_ready(
        temporal_block(x2, params2, kernel_size=kernel_size, dilation=dilation))
    ref2 = temporal_block_reference(x2, params2, kernel_size=kernel_size, dilation=dilation)
    assert jnp.allclose(out2, ref2, atol=1e-4, rtol=1e-4), "mismatch (identity shortcut case)"

    print("KERNEL_OK")
</pallas_src>

<mosaic_0001>
module attributes {stable_mosaic.version = 11 : i64} {
  func.func @temporal_block_kernel(%arg0: i32, %arg1: memref<2x16x4xf32, #tpu.memory_space<vmem>>, %arg2: memref<12x8xf32, #tpu.memory_space<vmem>>, %arg3: memref<1x8xf32, #tpu.memory_space<vmem>>, %arg4: memref<24x8xf32, #tpu.memory_space<vmem>>, %arg5: memref<1x8xf32, #tpu.memory_space<vmem>>, %arg6: memref<4x8xf32, #tpu.memory_space<vmem>>, %arg7: memref<1x8xf32, #tpu.memory_space<vmem>>, %arg8: memref<32x8xf32, #tpu.memory_space<vmem>>) attributes {dimension_semantics = [#tpu.dimension_semantics<arbitrary>], iteration_bounds = array<i64: 1>, scalar_prefetch = 0 : i64, scratch_operands = 0 : i64, tpu.core_type = #tpu.core_type<tc>, window_params = [{pipeline_mode = #tpu.pipeline_mode<synchronous>, transform_indices = @transform_0, window_bounds = array<i64: 2, 16, 4>}, {pipeline_mode = #tpu.pipeline_mode<synchronous>, transform_indices = @transform_1, window_bounds = array<i64: 12, 8>}, {pipeline_mode = #tpu.pipeline_mode<synchronous>, transform_indices = @transform_2, window_bounds = array<i64: 1, 8>}, {pipeline_mode = #tpu.pipeline_mode<synchronous>, transform_indices = @transform_3, window_bounds = array<i64: 24, 8>}, {pipeline_mode = #tpu.pipeline_mode<synchronous>, transform_indices = @transform_4, window_bounds = array<i64: 1, 8>}, {pipeline_mode = #tpu.pipeline_mode<synchronous>, transform_indices = @transform_5, window_bounds = array<i64: 4, 8>}, {pipeline_mode = #tpu.pipeline_mode<synchronous>, transform_indices = @transform_6, window_bounds = array<i64: 1, 8>}, {pipeline_mode = #tpu.pipeline_mode<synchronous>, transform_indices = @transform_7, window_bounds = array<i64: 32, 8>}]} {
    %c0 = arith.constant 0 : index
    %c0_0 = arith.constant 0 : index
    %c0_1 = arith.constant 0 : index
    %0 = vector.load %arg1[%c0, %c0_0, %c0_1] : memref<2x16x4xf32, #tpu.memory_space<vmem>>, vector<2x16x4xf32>
    %cst = arith.constant 0.000000e+00 : f32
    %1 = vector.broadcast %cst : f32 to vector<2x4x4xf32>
    %2 = tpu.concatenate %1, %0 in 1 : vector<2x4x4xf32>, vector<2x16x4xf32> -> vector<2x20x4xf32>
    %3 = vector.extract_strided_slice %2 {offsets = [0, 0, 0], sizes = [2, 16, 4], strides = [1, 1, 1]} : vector<2x20x4xf32> to vector<2x16x4xf32>
    %4 = vector.extract_strided_slice %2 {offsets = [0, 2, 0], sizes = [2, 16, 4], strides = [1, 1, 1]} : vector<2x20x4xf32> to vector<2x16x4xf32>
    %5 = vector.extract_strided_slice %2 {offsets = [0, 4, 0], sizes = [2, 16, 4], strides = [1, 1, 1]} : vector<2x20x4xf32> to vector<2x16x4xf32>
    %6 = tpu.concatenate %3, %4, %5 in 2 : vector<2x16x4xf32>, vector<2x16x4xf32>, vector<2x16x4xf32> -> vector<2x16x12xf32>
    %7 = vector.shape_cast %6 : vector<2x16x12xf32> to vector<32x12xf32>
    %c0_2 = arith.constant 0 : index
    %c0_3 = arith.constant 0 : index
    %8 = vector.load %arg2[%c0_2, %c0_3] : memref<12x8xf32, #tpu.memory_space<vmem>>, vector<12x8xf32>
    %cst_4 = arith.constant dense<0.000000e+00> : vector<32x8xf32>
    %9 = tpu.matmul %7, %8, %cst_4 {dimension_numbers = #tpu.dot_dimension_numbers<[1], [0], [0], [1], [0, 0, 1, 1], [], []>} : vector<32x12xf32>, vector<12x8xf32>, vector<32x8xf32> -> vector<32x8xf32>
    %c0_5 = arith.constant 0 : index
    %c0_6 = arith.constant 0 : index
    %10 = vector.load %arg3[%c0_5, %c0_6] : memref<1x8xf32, #tpu.memory_space<vmem>>, vector<1x8xf32>
    %11 = vector.broadcast %10 : vector<1x8xf32> to vector<32x8xf32>
    %12 = arith.addf %9, %11 : vector<32x8xf32>
    %cst_7 = arith.constant 0.000000e+00 : f32
    %13 = vector.broadcast %cst_7 : f32 to vector<32x8xf32>
    %14 = arith.maximumf %12, %13 : vector<32x8xf32>
    %15 = vector.shape_cast %14 : vector<32x8xf32> to vector<2x16x8xf32>
    %cst_8 = arith.constant 0.000000e+00 : f32
    %16 = vector.broadcast %cst_8 : f32 to vector<2x4x8xf32>
    %17 = tpu.concatenate %16, %15 in 1 : vector<2x4x8xf32>, vector<2x16x8xf32> -> vector<2x20x8xf32>
    %18 = vector.extract_strided_slice %17 {offsets = [0, 0, 0], sizes = [2, 16, 8], strides = [1, 1, 1]} : vector<2x20x8xf32> to vector<2x16x8xf32>
    %19 = vector.extract_strided_slice %17 {offsets = [0, 2, 0], sizes = [2, 16, 8], strides = [1, 1, 1]} : vector<2x20x8xf32> to vector<2x16x8xf32>
    %20 = vector.extract_strided_slice %17 {offsets = [0, 4, 0], sizes = [2, 16, 8], strides = [1, 1, 1]} : vector<2x20x8xf32> to vector<2x16x8xf32>
    %21 = tpu.concatenate %18, %19, %20 in 2 : vector<2x16x8xf32>, vector<2x16x8xf32>, vector<2x16x8xf32> -> vector<2x16x24xf32>
    %22 = vector.shape_cast %21 : vector<2x16x24xf32> to vector<32x24xf32>
    %c0_9 = arith.constant 0 : index
    %c0_10 = arith.constant 0 : index
    %23 = vector.load %arg4[%c0_9, %c0_10] : memref<24x8xf32, #tpu.memory_space<vmem>>, vector<24x8xf32>
    %cst_11 = arith.constant dense<0.000000e+00> : vector<32x8xf32>
    %24 = tpu.matmul %22, %23, %cst_11 {dimension_numbers = #tpu.dot_dimension_numbers<[1], [0], [0], [1], [0, 0, 1, 1], [], []>} : vector<32x24xf32>, vector<24x8xf32>, vector<32x8xf32> -> vector<32x8xf32>
    %c0_12 = arith.constant 0 : index
    %c0_13 = arith.constant 0 : index
    %25 = vector.load %arg5[%c0_12, %c0_13] : memref<1x8xf32, #tpu.memory_space<vmem>>, vector<1x8xf32>
    %26 = vector.broadcast %25 : vector<1x8xf32> to vector<32x8xf32>
    %27 = arith.addf %24, %26 : vector<32x8xf32>
    %cst_14 = arith.constant 0.000000e+00 : f32
    %28 = vector.broadcast %cst_14 : f32 to vector<32x8xf32>
    %29 = arith.maximumf %27, %28 : vector<32x8xf32>
    %30 = vector.shape_cast %0 : vector<2x16x4xf32> to vector<32x4xf32>
    %c0_15 = arith.constant 0 : index
    %c0_16 = arith.constant 0 : index
    %31 = vector.load %arg6[%c0_15, %c0_16] : memref<4x8xf32, #tpu.memory_space<vmem>>, vector<4x8xf32>
    %cst_17 = arith.constant dense<0.000000e+00> : vector<32x8xf32>
    %32 = tpu.matmul %30, %31, %cst_17 {dimension_numbers = #tpu.dot_dimension_numbers<[1], [0], [0], [1], [0, 0, 1, 1], [], []>} : vector<32x4xf32>, vector<4x8xf32>, vector<32x8xf32> -> vector<32x8xf32>
    %c0_18 = arith.constant 0 : index
    %c0_19 = arith.constant 0 : index
    %33 = vector.load %arg7[%c0_18, %c0_19] : memref<1x8xf32, #tpu.memory_space<vmem>>, vector<1x8xf32>
    %34 = vector.broadcast %33 : vector<1x8xf32> to vector<32x8xf32>
    %35 = arith.addf %32, %34 : vector<32x8xf32>
    %36 = arith.addf %29, %35 : vector<32x8xf32>
    %cst_20 = arith.constant 0.000000e+00 : f32
    %37 = vector.broadcast %cst_20 : f32 to vector<32x8xf32>
    %38 = arith.maximumf %36, %37 : vector<32x8xf32>
    %c0_21 = arith.constant 0 : index
    %c0_22 = arith.constant 0 : index
    %39 = vector.load %arg8[%c0_21, %c0_22] : memref<32x8xf32, #tpu.memory_space<vmem>>, vector<32x8xf32>
    tpu.vector_store %arg8[%c0_21, %c0_22], %38 {strides = array<i32>} : memref<32x8xf32, #tpu.memory_space<vmem>>, vector<32x8xf32>,
    return
  }
  func.func @transform_0(%arg0: i32) -> (i32, i32, i32) {
    %c0_i32 = arith.constant 0 : i32
    %c0_i32_0 = arith.constant 0 : i32
    %c0_i32_1 = arith.constant 0 : i32
    %c0_i32_2 = arith.constant 0 : i32
    return %c0_i32, %c0_i32_0, %c0_i32_1 : i32, i32, i32
  }
  func.func @transform_1(%arg0: i32) -> (i32, i32) {
    %c0_i32 = arith.constant 0 : i32
    %c0_i32_0 = arith.constant 0 : i32
    %c0_i32_1 = arith.constant 0 : i32
    return %c0_i32, %c0_i32_0 : i32, i32
  }
  func.func @transform_2(%arg0: i32) -> (i32, i32) {
    %c0_i32 = arith.constant 0 : i32
    %c0_i32_0 = arith.constant 0 : i32
    %c0_i32_1 = arith.constant 0 : i32
    return %c0_i32, %c0_i32_0 : i32, i32
  }
  func.func @transform_3(%arg0: i32) -> (i32, i32) {
    %c0_i32 = arith.constant 0 : i32
    %c0_i32_0 = arith.constant 0 : i32
    %c0_i32_1 = arith.constant 0 : i32
    return %c0_i32, %c0_i32_0 : i32, i32
  }
  func.func @transform_4(%arg0: i32) -> (i32, i32) {
    %c0_i32 = arith.constant 0 : i32
    %c0_i32_0 = arith.constant 0 : i32
    %c0_i32_1 = arith.constant 0 : i32
    return %c0_i32, %c0_i32_0 : i32, i32
  }
  func.func @transform_5(%arg0: i32) -> (i32, i32) {
    %c0_i32 = arith.constant 0 : i32
    %c0_i32_0 = arith.constant 0 : i32
    %c0_i32_1 = arith.constant 0 : i32
    return %c0_i32, %c0_i32_0 : i32, i32
  }
  func.func @transform_6(%arg0: i32) -> (i32, i32) {
    %c0_i32 = arith.constant 0 : i32
    %c0_i32_0 = arith.constant 0 : i32
    %c0_i32_1 = arith.constant 0 : i32
    return %c0_i32, %c0_i32_0 : i32, i32
  }
  func.func @transform_7(%arg0: i32) -> (i32, i32) {
    %c0_i32 = arith.constant 0 : i32
    %c0_i32_0 = arith.constant 0 : i32
    %c0_i32_1 = arith.constant 0 : i32
    return %c0_i32, %c0_i32_0 : i32, i32
  }
}

</mosaic_0001>

<llo_original>
// kernel: tpu_custom_call.1
$region0: #{tpu_custom_call.1}
  #allocation0 [shape = 'u32[]', space=smem, size = 0x4, offset = 0x4, fixed_abs, tag = 'smem constant byte address 0x4 - core index']
  #allocation1 [shape = 'u32[144,128]{1,0:T(1,128)}', space=vmem, size = 0x12000, scoped, tag = 'internal scratch']
  %s0 = inlined_call_operand.vmem [shape: f32[2,16,4], index: 0, kind: input, shape index: {}]
  %s1 = inlined_call_operand.vmem [shape: f32[12,8], index: 1, kind: input, shape index: {}]
  %s2 = inlined_call_operand.vmem [shape: f32[1,8], index: 2, kind: input, shape index: {}]
  %s3 = inlined_call_operand.vmem [shape: f32[24,8], index: 3, kind: input, shape index: {}]
  %s4 = inlined_call_operand.vmem [shape: f32[1,8], index: 4, kind: input, shape index: {}]
  %s5 = inlined_call_operand.vmem [shape: f32[4,8], index: 5, kind: input, shape index: {}]
  %s6 = inlined_call_operand.vmem [shape: f32[1,8], index: 6, kind: input, shape index: {}]
  %s7 = inlined_call_operand.vmem [shape: f32[32,8], index: 7, kind: output, shape index: {}]
  %s8 = sld [smem:[#allocation0]]
  $region38: #{tpu_custom_call.1} parent=0
    _
  %s10 = ssub.s32 1, %s8
  %s11 = scalar_select 0, %s10, %s8
  // Predicated region
  $region2: #{tpu_custom_call.1} parent=0 // pred_check
    _
  $region3: #{tpu_custom_call.1} parent=0 // pred_check_branch
    %13 = sbr.rel (0) target = $region5
  $region4: #{tpu_custom_call.1} parent=0 // pred_region
    _
  $region5: #{tpu_custom_call.1} parent=0 // pred_fallthru
    _
  // Predicated region
  $region6: #{tpu_custom_call.1} parent=0 // pred_check
    _
  $region7: #{tpu_custom_call.1} parent=0 // pred_check_branch
    %15 = sbr.rel (0) target = $region9
  $region8: #{tpu_custom_call.1} parent=0 // pred_region
    _
  $region9: #{tpu_custom_call.1} parent=0 // pred_fallthru
    _
  // Predicated region
  $region10: #{tpu_custom_call.1} parent=0 // pred_check
    _
  $region11: #{tpu_custom_call.1} parent=0 // pred_check_branch
    %17 = sbr.rel (0) target = $region13
  $region12: #{tpu_custom_call.1} parent=0 // pred_region
    _
  $region13: #{tpu_custom_call.1} parent=0 // pred_fallthru
    _
  // Predicated region
  $region14: #{tpu_custom_call.1} parent=0 // pred_check
    _
  $region15: #{tpu_custom_call.1} parent=0 // pred_check_branch
    %19 = sbr.rel (0) target = $region17
  $region16: #{tpu_custom_call.1} parent=0 // pred_region
    _
  $region17: #{tpu_custom_call.1} parent=0 // pred_fallthru
    _
  // Predicated region
  $region18: #{tpu_custom_call.1} parent=0 // pred_check
    _
  $region19: #{tpu_custom_call.1} parent=0 // pred_check_branch
    %21 = sbr.rel (0) target = $region21
  $region20: #{tpu_custom_call.1} parent=0 // pred_region
    _
  $region21: #{tpu_custom_call.1} parent=0 // pred_fallthru
    _
  // Predicated region
  $region22: #{tpu_custom_call.1} parent=0 // pred_check
    _
  $region23: #{tpu_custom_call.1} parent=0 // pred_check_branch
    %23 = sbr.rel (0) target = $region25
  $region24: #{tpu_custom_call.1} parent=0 // pred_region
    _
  $region25: #{tpu_custom_call.1} parent=0 // pred_fallthru
    _
  // Predicated region
  $region26: #{tpu_custom_call.1} parent=0 // pred_check
    _
  $region27: #{tpu_custom_call.1} parent=0 // pred_check_branch
    %25 = sbr.rel (0) target = $region29
  $region28: #{tpu_custom_call.1} parent=0 // pred_region
    _
  $region29: #{tpu_custom_call.1} parent=0 // pred_fallthru
    _
  %v26 = vld [vmem:[%s0] sm:$0xff]
  %v27 = vld [vmem:[%s0 + $0x8] sm:$0xff]
  %v28 = vld [vmem:[%s0 + $0x10] sm:$0xff]
  %v29 = vld [vmem:[%s0 + $0x18] sm:$0xff]
  %vm34 = vcmask 1043456
  %v35 = vrot.slane %v26, 4
  %v36 = vrot.slane %v27, 4
  %v37 = vsel %vm34, %v35, %v36
  %v38 = vrot.slane %v28, 4
  %v39 = vrot.slane %v29, 4
  %v40 = vsel %vm34, %v38, %v39
  %v45 = vsel %vm34, 0.0, %v35
  %v46 = vsel %vm34, 0.0, %v38
  %vm49 = vcmask 1045504
  %v50 = vrot.slane %v45, 2
  %v51 = vrot.slane %v37, 2
  %v52 = vsel %vm49, %v50, %v51
  %v53 = vrot.slane %v36, 2
  %v54 = vsel %vm49, %v51, %v53
  %v55 = vrot.slane %v46, 2
  %v56 = vrot.slane %v40, 2
  %v57 = vsel %vm49, %v55, %v56
  %v58 = vrot.slane %v39, 2
  %v59 = vsel %vm49, %v56, %v58
  %60 = vrot.lane.b32.xlu0 %v52, 4
  %v61 = vpop.permute.xlu0 %60
  %62 = vrot.lane.b32.xlu0 %v54, 4
  %v63 = vpop.permute.xlu0 %62
  %64 = vrot.lane.b32.xlu0 %v57, 4
  %v65 = vpop.permute.xlu0 %64
  %66 = vrot.lane.b32.xlu0 %v59, 4
  %v67 = vpop.permute.xlu0 %66
  %v72 = vrot.slane %v45, 4
  %v73 = vrot.slane %v37, 4
  %v74 = vsel %vm34, %v72, %v73
  %v75 = vrot.slane %v36, 4
  %v76 = vsel %vm34, %v73, %v75
  %v77 = vrot.slane %v46, 4
  %v78 = vrot.slane %v40, 4
  %v79 = vsel %vm34, %v77, %v78
  %v80 = vrot.slane %v39, 4
  %v81 = vsel %vm34, %v78, %v80
  %82 = vrot.lane.b32.xlu0 %v74, 8
  %v83 = vpop.permute.xlu0 %82
  %84 = vrot.lane.b32.xlu0 %v76, 8
  %v85 = vpop.permute.xlu0 %84
  %86 = vrot.lane.b32.xlu0 %v79, 8
  %v87 = vpop.permute.xlu0 %86
  %88 = vrot.lane.b32.xlu0 %v81, 8
  %v89 = vpop.permute.xlu0 %88
  %vm94 = vcmask 31744
  %v95 = vsel %vm94, %v45, %v61
  %v96 = vsel %vm94, %v37, %v63
  %v97 = vsel %vm94, %v46, %v65
  %v98 = vsel %vm94, %v40, %v67
  %vm99 = vcmask 64512
  %v100 = vsel %vm99, %v95, %v83
  %v101 = vsel %vm99, %v96, %v85
  %v102 = vsel %vm99, %v97, %v87
  %v103 = vsel %vm99, %v98, %v89
  %v104 = vld [vmem:[%s1] sm:$0xff]
  %v105 = vld [vmem:[%s1 + $0x8] sm:$0xf]
  %v106 = vld [vmem:[%s2] sm:$0x1]
  %v108 = vlaneseq
  %v109 = vshrl.u32 %v108, 7
  %v110 = vsub.s32 0, %v109
  %v111 = vrot.slane %v106, %v110
  %vm113 = vcmask 97280
  %v115 = vsel %vm113, %v100, 0
  %v118 = vsel %vm113, %v101, 0
  %v121 = vsel %vm113, %v102, 0
  %v124 = vsel %vm113, %v103, 0
  %v127 = vsel %vm34, %v105, 0
  %129 = vmatprep.subr.mxu0 0.0
  %130 = vmatpush1.msra.mxu0 %v104
  %131 = vmatprep.subr.mxu0 0.0
  %132 = vmatpush1.msra.mxu0 %v127
  %133 = vmatprep.subr.mxu0 0.0
  %134 = vmatpush1.msra.mxu0 0.0
  %135 = vmatprep.subr.mxu0 0.0
  %136 = vmatpush1.msra.mxu0 0.0
  %137 = vmatprep.subr.mxu0 0.0
  %138 = vmatpush1.msra.mxu0 0.0
  %139 = vmatprep.subr.mxu0 0.0
  %140 = vmatpush1.msra.mxu0 0.0
  %141 = vmatprep.subr.mxu0 0.0
  %142 = vmatpush1.msra.mxu0 0.0
  %143 = vmatprep.subr.mxu0 0.0
  %144 = vmatpush1.msra.mxu0 0.0
  %145 = vmatprep.subr.mxu0 0.0
  %146 = vmatpush1.msra.mxu0 0.0
  %147 = vmatprep.subr.mxu0 0.0
  %148 = vmatpush1.msra.mxu0 0.0
  %149 = vmatprep.subr.mxu0 0.0
  %150 = vmatpush1.msra.mxu0 0.0
  %151 = vmatprep.subr.mxu0 0.0
  %152 = vmatpush1.msra.mxu0 0.0
  %153 = vmatprep.subr.mxu0 0.0
  %154 = vmatpush1.msra.mxu0 0.0
  %155 = vmatprep.subr.mxu0 0.0
  %156 = vmatpush1.msra.mxu0 0.0
  %157 = vmatprep.subr.mxu0 0.0
  %158 = vmatpush1.msra.mxu0 0.0
  %159 = vmatprep.subr.mxu0 0.0
  %160 = vmatpush1.msra.mxu0 0.0
  %161 = vmatprep.subr.mxu0 0.0
  %162 = vmatpush1.msra.mxu0 0.0
  %163 = vmatprep.subr.mxu0 0.0
  %164 = vmatpush1.msra.mxu0 0.0
  %165 = vmatprep.subr.mxu0 0.0
  %166 = vmatpush1.msra.mxu0 0.0
  %167 = vmatprep.subr.mxu0 0.0
  %168 = vmatpush1.msra.mxu0 0.0
  %169 = vmatprep.subr.mxu0 0.0
  %170 = vmatpush1.msra.mxu0 0.0
  %171 = vmatprep.subr.mxu0 0.0
  %172 = vmatpush1.msra.mxu0 0.0
  %173 = vmatprep.subr.mxu0 0.0
  %174 = vmatpush1.msra.mxu0 0.0
  %175 = vmatprep.subr.mxu0 0.0
  %176 = vmatpush1.msra.mxu0 0.0
  %177 = vmatprep.subr.mxu0 0.0
  %178 = vmatpush1.msra.mxu0 0.0
  %179 = vmatprep.subr.mxu0 0.0
  %180 = vmatpush1.msra.mxu0 0.0
  %181 = vmatprep.subr.mxu0 0.0
  %182 = vmatpush1.msra.mxu0 0.0
  %183 = vmatprep.subr.mxu0 0.0
  %184 = vmatpush1.msra.mxu0 0.0
  %185 = vmatprep.subr.mxu0 0.0
  %186 = vmatpush1.msra.mxu0 0.0
  %187 = vmatprep.subr.mxu0 0.0
  %188 = vmatpush1.msra.mxu0 0.0
  %189 = vmatprep.subr.mxu0 0.0
  %190 = vmatpush1.msra.mxu0 0.0
  %191 = vmatprep.subr.mxu0 0.0
  %192 = vmatpush1.msra.mxu0 0.0
  %193 = vmatprep.mubr.f32.mxu0 0.0
  %194 = vmatmul.mubr.f32.gmra.mrb[0].mxu0 %v115
  %v195 = vpop.f32.mrb[0].mxu0
  %v196 = vadd.f32 %v111, %v195
  %v197 = vpop.f32.mrb[0].mxu0
  %198 = vmatprep.mubr.f32.mxu0 0.0
  %199 = vmatmul.mubr.f32.gmra.mrb[0].mxu0 %v118
  %v200 = vpop.f32.mrb[0].mxu0
  %v201 = vadd.f32 %v111, %v200
  %v202 = vpop.f32.mrb[0].mxu0
  %203 = vmatprep.mubr.f32.mxu0 0.0
  %204 = vmatmul.mubr.f32.gmra.mrb[0].mxu0 %v121
  %v205 = vpop.f32.mrb[0].mxu0
  %v206 = vadd.f32 %v111, %v205
  %v207 = vpop.f32.mrb[0].mxu0
  %208 = vmatprep.mubr.f32.mxu0 0.0
  %209 = vmatmul.mubr.f32.gmra.mrb[0].mxu0 %v124
  %v210 = vpop.f32.mrb[0].mxu0
  %v211 = vadd.f32 %v111, %v210
  %v212 = vpop.f32.mrb[0].mxu0
  %213 = vdwg.mxu0
  %v214 = vmax.f32 %v196, 0.0
  %v215 = vmax.f32 %v201, 0.0
  %v216 = vmax.f32 %v206, 0.0
  %v217 = vmax.f32 %v211, 0.0
  %v222 = vrot.slane %v214, 4
  %v223 = vrot.slane %v215, 4
  %v224 = vsel %vm34, %v222, %v223
  %v225 = vrot.slane %v216, 4
  %v226 = vrot.slane %v217, 4
  %v227 = vsel %vm34, %v225, %v226
  %v232 = vsel %vm34, 0.0, %v222
  %v233 = vsel %vm34, 0.0, %v225
  %v236 = vrot.slane %v232, 2
  %v237 = vrot.slane %v224, 2
  %v238 = vsel %vm49, %v236, %v237
  %v239 = vrot.slane %v223, 2
  %v240 = vsel %vm49, %v237, %v239
  %v241 = vrot.slane %v233, 2
  %v242 = vrot.slane %v227, 2
  %v243 = vsel %vm49, %v241, %v242
  %v244 = vrot.slane %v226, 2
  %v245 = vsel %vm49, %v242, %v244
  %246 = vrot.lane.b32.xlu0 %v238, 8
  %v247 = vpop.permute.xlu0 %246
  %248 = vrot.lane.b32.xlu0 %v240, 8
  %v249 = vpop.permute.xlu0 %248
  %250 = vrot.lane.b32.xlu0 %v243, 8
  %v251 = vpop.permute.xlu0 %250
  %252 = vrot.lane.b32.xlu0 %v245, 8
  %v253 = vpop.permute.xlu0 %252
  %v258 = vrot.slane %v232, 4
  %v259 = vrot.slane %v224, 4
  %v260 = vsel %vm34, %v258, %v259
  %v261 = vrot.slane %v223, 4
  %v262 = vsel %vm34, %v259, %v261
  %v263 = vrot.slane %v233, 4
  %v264 = vrot.slane %v227, 4
  %v265 = vsel %vm34, %v263, %v264
  %v266 = vrot.slane %v226, 4
  %v267 = vsel %vm34, %v264, %v266
  %268 = vrot.lane.b32.xlu0 %v260, 16
  %v269 = vpop.permute.xlu0 %268
  %270 = vrot.lane.b32.xlu0 %v262, 16
  %v271 = vpop.permute.xlu0 %270
  %272 = vrot.lane.b32.xlu0 %v265, 16
  %v273 = vpop.permute.xlu0 %272
  %274 = vrot.lane.b32.xlu0 %v267, 16
  %v275 = vpop.permute.xlu0 %274
  %v280 = vsel %vm99, %v232, %v247
  %v281 = vsel %vm99, %v224, %v249
  %v282 = vsel %vm99, %v233, %v251
  %v283 = vsel %vm99, %v227, %v253
  %vm284 = vcmask 130048
  %v285 = vsel %vm284, %v280, %v269
  %v286 = vsel %vm284, %v281, %v271
  %v287 = vsel %vm284, %v282, %v273
  %v288 = vsel %vm284, %v283, %v275
  %v289 = vld [vmem:[%s3] sm:$0xff]
  %v290 = vld [vmem:[%s3 + $0x8] sm:$0xff]
  %v291 = vld [vmem:[%s3 + $0x10] sm:$0xff]
  %v292 = vld [vmem:[%s4] sm:$0x1]
  %v294 = vlaneseq
  %v295 = vshrl.u32 %v294, 7
  %v296 = vsub.s32 0, %v295
  %v297 = vrot.slane %v292, %v296
  %vm299 = vcmask 195584
  %v301 = vsel %vm299, %v285, 0
  %v304 = vsel %vm299, %v286, 0
  %v307 = vsel %vm299, %v287, 0
  %v310 = vsel %vm299, %v288, 0
  %312 = vmatprep.subr.mxu0 0.0
  %313 = vmatpush1.msra.mxu0 %v289
  %314 = vmatprep.subr.mxu0 0.0
  %315 = vmatpush1.msra.mxu0 %v290
  %316 = vmatprep.subr.mxu0 0.0
  %317 = vmatpush1.msra.mxu0 %v291
  %318 = vmatprep.subr.mxu0 0.0
  %319 = vmatpush1.msra.mxu0 0.0
  %320 = vmatprep.subr.mxu0 0.0
  %321 = vmatpush1.msra.mxu0 0.0
  %322 = vmatprep.subr.mxu0 0.0
  %323 = vmatpush1.msra.mxu0 0.0
  %324 = vmatprep.subr.mxu0 0.0
  %325 = vmatpush1.msra.mxu0 0.0
  %326 = vmatprep.subr.mxu0 0.0
  %327 = vmatpush1.msra.mxu0 0.0
  %328 = vmatprep.subr.mxu0 0.0
  %329 = vmatpush1.msra.mxu0 0.0
  %330 = vmatprep.subr.mxu0 0.0
  %331 = vmatpush1.msra.mxu0 0.0
  %332 = vmatprep.subr.mxu0 0.0
  %333 = vmatpush1.msra.mxu0 0.0
  %334 = vmatprep.subr.mxu0 0.0
  %335 = vmatpush1.msra.mxu0 0.0
  %336 = vmatprep.subr.mxu0 0.0
  %337 = vmatpush1.msra.mxu0 0.0
  %338 = vmatprep.subr.mxu0 0.0
  %339 = vmatpush1.msra.mxu0 0.0
  %340 = vmatprep.subr.mxu0 0.0
  %341 = vmatpush1.msra.mxu0 0.0
  %342 = vmatprep.subr.mxu0 0.0
  %343 = vmatpush1.msra.mxu0 0.0
  %344 = vmatprep.subr.mxu0 0.0
  %345 = vmatpush1.msra.mxu0 0.0
  %346 = vmatprep.subr.mxu0 0.0
  %347 = vmatpush1.msra.mxu0 0.0
  %348 = vmatprep.subr.mxu0 0.0
  %349 = vmatpush1.msra.mxu0 0.0
  %350 = vmatprep.subr.mxu0 0.0
  %351 = vmatpush1.msra.mxu0 0.0
  %352 = vmatprep.subr.mxu0 0.0
  %353 = vmatpush1.msra.mxu0 0.0
  %354 = vmatprep.subr.mxu0 0.0
  %355 = vmatpush1.msra.mxu0 0.0
  %356 = vmatprep.subr.mxu0 0.0
  %357 = vmatpush1.msra.mxu0 0.0
  %358 = vmatprep.subr.mxu0 0.0
  %359 = vmatpush1.msra.mxu0 0.0
  %360 = vmatprep.subr.mxu0 0.0
  %361 = vmatpush1.msra.mxu0 0.0
  %362 = vmatprep.subr.mxu0 0.0
  %363 = vmatpush1.msra.mxu0 0.0
  %364 = vmatprep.subr.mxu0 0.0
  %365 = vmatpush1.msra.mxu0 0.0
  %366 = vmatprep.subr.mxu0 0.0
  %367 = vmatpush1.msra.mxu0 0.0
  %368 = vmatprep.subr.mxu0 0.0
  %369 = vmatpush1.msra.mxu0 0.0
  %370 = vmatprep.subr.mxu0 0.0
  %371 = vmatpush1.msra.mxu0 0.0
  %372 = vmatprep.subr.mxu0 0.0
  %373 = vmatpush1.msra.mxu0 0.0
  %374 = vmatprep.subr.mxu0 0.0
  %375 = vmatpush1.msra.mxu0 0.0
  %376 = vmatprep.mubr.f32.mxu0 0.0
  %377 = vmatmul.mubr.f32.gmra.mrb[0].mxu0 %v301
  %v378 = vpop.f32.mrb[0].mxu0
  %v379 = vadd.f32 %v297, %v378
  %v380 = vpop.f32.mrb[0].mxu0
  %381 = vmatprep.mubr.f32.mxu0 0.0
  %382 = vmatmul.mubr.f32.gmra.mrb[0].mxu0 %v304
  %v383 = vpop.f32.mrb[0].mxu0
  %v384 = vadd.f32 %v297, %v383
  %v385 = vpop.f32.mrb[0].mxu0
  %386 = vmatprep.mubr.f32.mxu0 0.0
  %387 = vmatmul.mubr.f32.gmra.mrb[0].mxu0 %v307
  %v388 = vpop.f32.mrb[0].mxu0
  %v389 = vadd.f32 %v297, %v388
  %v390 = vpop.f32.mrb[0].mxu0
  %391 = vmatprep.mubr.f32.mxu0 0.0
  %392 = vmatmul.mubr.f32.gmra.mrb[0].mxu0 %v310
  %v393 = vpop.f32.mrb[0].mxu0
  %v394 = vadd.f32 %v297, %v393
  %v395 = vpop.f32.mrb[0].mxu0
  %396 = vdwg.mxu0
  %v397 = vmax.f32 %v379, 0.0
  %v398 = vmax.f32 %v384, 0.0
  %v399 = vmax.f32 %v389, 0.0
  %v400 = vmax.f32 %v394, 0.0
  %v401 = vld [vmem:[%s5] sm:$0xf]
  %v402 = vld [vmem:[%s6] sm:$0x1]
  %v404 = vlaneseq
  %v405 = vshrl.u32 %v404, 7
  %v406 = vsub.s32 0, %v405
  %v407 = vrot.slane %v402, %v406
  %v409 = vsel %vm94, %v26, 0
  %v411 = vsel %vm94, %v27, 0
  %v413 = vsel %vm94, %v28, 0
  %v415 = vsel %vm94, %v29, 0
  %v418 = vsel %vm34, %v401, 0
  %420 = vmatprep.subr.mxu0 0.0
  %421 = vmatpush1.msra.mxu0 %v418
  %422 = vmatprep.subr.mxu0 0.0
  %423 = vmatpush1.msra.mxu0 0.0
  %424 = vmatprep.subr.mxu0 0.0
  %425 = vmatpush1.msra.mxu0 0.0
  %426 = vmatprep.subr.mxu0 0.0
  %427 = vmatpush1.msra.mxu0 0.0
  %428 = vmatprep.subr.mxu0 0.0
  %429 = vmatpush1.msra.mxu0 0.0
  %430 = vmatprep.subr.mxu0 0.0
  %431 = vmatpush1.msra.mxu0 0.0
  %432 = vmatprep.subr.mxu0 0.0
  %433 = vmatpush1.msra.mxu0 0.0
  %434 = vmatprep.subr.mxu0 0.0
  %435 = vmatpush1.msra.mxu0 0.0
  %436 = vmatprep.subr.mxu0 0.0
  %437 = vmatpush1.msra.mxu0 0.0
  %438 = vmatprep.subr.mxu0 0.0
  %439 = vmatpush1.msra.mxu0 0.0
  %440 = vmatprep.subr.mxu0 0.0
  %441 = vmatpush1.msra.mxu0 0.0
  %442 = vmatprep.subr.mxu0 0.0
  %443 = vmatpush1.msra.mxu0 0.0
  %444 = vmatprep.subr.mxu0 0.0
  %445 = vmatpush1.msra.mxu0 0.0
  %446 = vmatprep.subr.mxu0 0.0
  %447 = vmatpush1.msra.mxu0 0.0
  %448 = vmatprep.subr.mxu0 0.0
  %449 = vmatpush1.msra.mxu0 0.0
  %450 = vmatprep.subr.mxu0 0.0
  %451 = vmatpush1.msra.mxu0 0.0
  %452 = vmatprep.subr.mxu0 0.0
  %453 = vmatpush1.msra.mxu0 0.0
  %454 = vmatprep.subr.mxu0 0.0
  %455 = vmatpush1.msra.mxu0 0.0
  %456 = vmatprep.subr.mxu0 0.0
  %457 = vmatpush1.msra.mxu0 0.0
  %458 = vmatprep.subr.mxu0 0.0
  %459 = vmatpush1.msra.mxu0 0.0
  %460 = vmatprep.subr.mxu0 0.0
  %461 = vmatpush1.msra.mxu0 0.0
  %462 = vmatprep.subr.mxu0 0.0
  %463 = vmatpush1.msra.mxu0 0.0
  %464 = vmatprep.subr.mxu0 0.0
  %465 = vmatpush1.msra.mxu0 0.0
  %466 = vmatprep.subr.mxu0 0.0
  %467 = vmatpush1.msra.mxu0 0.0
  %468 = vmatprep.subr.mxu0 0.0
  %469 = vmatpush1.msra.mxu0 0.0
  %470 = vmatprep.subr.mxu0 0.0
  %471 = vmatpush1.msra.mxu0 0.0
  %472 = vmatprep.subr.mxu0 0.0
  %473 = vmatpush1.msra.mxu0 0.0
  %474 = vmatprep.subr.mxu0 0.0
  %475 = vmatpush1.msra.mxu0 0.0
  %476 = vmatprep.subr.mxu0 0.0
  %477 = vmatpush1.msra.mxu0 0.0
  %478 = vmatprep.subr.mxu0 0.0
  %479 = vmatpush1.msra.mxu0 0.0
  %480 = vmatprep.subr.mxu0 0.0
  %481 = vmatpush1.msra.mxu0 0.0
  %482 = vmatprep.subr.mxu0 0.0
  %483 = vmatpush1.msra.mxu0 0.0
  %484 = vmatprep.mubr.f32.mxu0 0.0
  %485 = vmatmul.mubr.f32.gmra.mrb[0].mxu0 %v409
  %v486 = vpop.f32.mrb[0].mxu0
  %v487 = vadd.f32 %v407, %v486
  %v488 = vpop.f32.mrb[0].mxu0
  %489 = vmatprep.mubr.f32.mxu0 0.0
  %490 = vmatmul.mubr.f32.gmra.mrb[0].mxu0 %v411
  %v491 = vpop.f32.mrb[0].mxu0
  %v492 = vadd.f32 %v407, %v491
  %v493 = vpop.f32.mrb[0].mxu0
  %494 = vmatprep.mubr.f32.mxu0 0.0
  %495 = vmatmul.mubr.f32.gmra.mrb[0].mxu0 %v413
  %v496 = vpop.f32.mrb[0].mxu0
  %v497 = vadd.f32 %v407, %v496
  %v498 = vpop.f32.mrb[0].mxu0
  %499 = vmatprep.mubr.f32.mxu0 0.0
  %500 = vmatmul.mubr.f32.gmra.mrb[0].mxu0 %v415
  %v501 = vpop.f32.mrb[0].mxu0
  %v502 = vadd.f32 %v407, %v501
  %v503 = vpop.f32.mrb[0].mxu0
  %504 = vdwg.mxu0
  %v505 = vadd.f32 %v397, %v487
  %v506 = vadd.f32 %v398, %v492
  %v507 = vadd.f32 %v399, %v497
  %v508 = vadd.f32 %v400, %v502
  %v509 = vmax.f32 %v505, 0.0
  %v510 = vmax.f32 %v506, 0.0
  %v511 = vmax.f32 %v507, 0.0
  %v512 = vmax.f32 %v508, 0.0
  %513 = vst.msk [vmem:[%s7] sm:$0xff] %vm99, %v509
  %514 = vst.msk [vmem:[%s7 + $0x8] sm:$0xff] %vm99, %v510
  %515 = vst.msk [vmem:[%s7 + $0x10] sm:$0xff] %vm99, %v511
  %516 = vst.msk [vmem:[%s7 + $0x18] sm:$0xff] %vm99, %v512
  // Predicated region
  $region30: #{tpu_custom_call.1} parent=0 // pred_check
    _
  $region31: #{tpu_custom_call.1} parent=0 // pred_check_branch
    %518 = sbr.rel (0) target = $region33
  $region32: #{tpu_custom_call.1} parent=0 // pred_region
    _
  $region33: #{tpu_custom_call.1} parent=0 // pred_fallthru
    _
  // Predicated region
  $region34: #{tpu_custom_call.1} parent=0 // pred_check
    _
  $region35: #{tpu_custom_call.1} parent=0 // pred_check_branch
    %520 = sbr.rel (0) target = $region37
  $region36: #{tpu_custom_call.1} parent=0 // pred_region
    _
  $region37: #{tpu_custom_call.1} parent=0 // pred_fallthru
    _

</llo_original>
